<compile_context>
chip_gen: v6e
topology: v6e:2x2x1
jax: 0.10.0
libtpu: 0.0.40
codegen_flags: <defaults>
</compile_context>

<pallas_src>
import jax
import jax.numpy as jnp
from jax.experimental import pallas as pl
from jax.experimental.pallas import tpu as pltpu


def _make_attn_pool_kernel(t_chunk):
    """Build the kernel with a static T-chunk size (must divide the block's T)."""
    tc = int(t_chunk)

    def kernel(w_ref, b_ref, lens_ref, x_ref, out_ref, s_ref):
        """One grid step processes a block of Bblk batch rows.

        w_ref    : VMEM f32   (1, D)        scorer weight (resident every step)
        b_ref    : SMEM f32   (1, 1)        scorer bias (scalar)
        lens_ref : VMEM int32 (Bblk, 1)     valid sequence lengths
        x_ref    : VMEM       (Bblk, T, D)  input rows (original dtype)
        out_ref  : VMEM       (Bblk, D)     pooled context vectors
        s_ref    : VMEM f32   (Bblk, T)     scratch for the raw scores
        """
        bblk, t_len, d = x_ref.shape
        nc = t_len // tc
        cdt = x_ref.dtype                 # compute dtype for the big passes
                                          # (bf16 stays packed bf16 on v6e/v7x)

        w = w_ref[...].astype(cdt).reshape((1, 1, d))       # (1, 1, D)
        bias = b_ref[0, 0]                                  # f32 scalar (SMEM)

        # ---- Pass 1: scores[b, t] = sum_d x*w, T-chunked, f32 accumulation.
        # Static chunk starts -> static (masked) VMEM stores; no full-tile temp.
        for c in range(nc):
            s = c * tc
            xc = x_ref[:, s:s + tc, :]                      # (Bblk, tc, D)
            s_ref[:, s:s + tc] = jnp.sum(xc * w, axis=-1, dtype=jnp.float32)

        # Length mask with a large finite negative (avoids -inf - -inf = NaN).
        lens = lens_ref[...]                                # (Bblk, 1) int32
        t_idx = jax.lax.broadcasted_iota(jnp.int32, (bblk, t_len), 1)
        scores = jnp.where(t_idx < lens, s_ref[...] + bias, jnp.float32(-1e30))

        # ---- Numerically stable softmax over T (small (Bblk, T) f32 arrays).
        m = jnp.max(scores, axis=-1, keepdims=True)         # (Bblk, 1)
        p = jnp.exp(scores - m)                             # (Bblk, T), unnormalized
        inv = 1.0 / jnp.sum(p, axis=-1, keepdims=True)      # exact; (Bblk,1) is free
        # lens == 0 rows: reference (-inf mask) would yield NaN; emit zeros
        # instead (pack_padded_sequence upstream guarantees lens >= 1 anyway).
        inv = jnp.where(lens > 0, inv, jnp.float32(0.0))

        # ---- Pass 2: ctx = sum_t p[t]*x[t], T-chunked, f32 accumulator.
        acc = jnp.zeros((bblk, d), jnp.float32)
        for c in range(nc):
            s = c * tc
            xc = x_ref[:, s:s + tc, :]                      # (Bblk, tc, D) in cdt
            pc = p[:, s:s + tc].astype(cdt)                 # (Bblk, tc)
            acc = acc + jnp.sum(pc[:, :, None] * xc, axis=1, dtype=jnp.float32)

        out_ref[...] = (acc * inv).astype(out_ref.dtype)

    return kernel


def _pick_block_rows(B, T, D, itemsize, *, target_hbm_bytes=4 * 1024 * 1024,
                     vmem_tile_cap=6 * 1024 * 1024, min_steps=4):
    """Rows per grid step.

    Targets ~4 MiB of HBM traffic per step while capping the lane/sublane
    padded VMEM footprint of the tile at ~6 MiB (2x double-buffered tiles plus
    chunk-sized temporaries stay well inside the 48 MiB limit we request; v7x
    has only 64 MiB physical VMEM per TensorCore). Also prefers >= min_steps
    grid steps so the pipeline overlaps DMA with compute and the "parallel"
    batch axis can use both v7x TensorCores — subject to the 8-row sublane
    granule required by the (Bblk, D) / (Bblk, 1) blocks (tiny batches fall
    back to a single full-batch block, which is legal).
    """
    d_pad = ((D + 127) // 128) * 128
    t_pad = ((T + 7) // 8) * 8
    hbm_row = max(1, T * D * itemsize)
    vmem_row = max(1, t_pad * d_pad * itemsize)
    bblk = max(1, min(target_hbm_bytes // hbm_row, vmem_tile_cap // vmem_row))
    bblk = min(bblk, max(8, (B + min_steps - 1) // min_steps))
    if bblk >= B:
        return B                        # full-dim block (legal for any B)
    bblk = max(8, (bblk // 8) * 8)      # sublane multiple of 8
    return int(min(bblk, B))


def _pick_t_chunk(T, D, itemsize, bblk, *, chunk_bytes=512 * 1024):
    """Largest divisor of T whose (bblk, tc, D) slab (lane-padded) stays under
    ~chunk_bytes, so per-chunk elementwise temporaries never add a full
    (bblk, T, D) intermediate on top of the pipelined input tile."""
    d_pad = ((D + 127) // 128) * 128
    per_t = max(1, bblk * d_pad * itemsize)
    max_tc = max(1, chunk_bytes // per_t)
    if max_tc >= T:
        return T
    best = 1
    for cand in range(1, max_tc + 1):
        if T % cand == 0:
            best = cand
    return best


def unflat_self_attention(inp, lens, weight, bias, *, block_rows=None,
                          t_chunk=None, input_buffers=None):
    """inp: (B, T, D), lens: (B,) int, weight: (1, D), bias: (1,)."""
    B, T, D = inp.shape
    itemsize = jnp.dtype(inp.dtype).itemsize
    if block_rows is None:
        block_rows = _pick_block_rows(B, T, D, itemsize)
    bblk = int(block_rows)
    if t_chunk is None:
        t_chunk = _pick_t_chunk(T, D, itemsize, bblk)
    tcn = int(t_chunk)
    assert T % tcn == 0, "t_chunk must divide T"
    grid = (pl.cdiv(B, bblk),)

    # Tiny parameters only; the big (B, T, D) input is passed through untouched.
    weight2d = weight.astype(jnp.float32).reshape(1, D)
    bias2d = bias.astype(jnp.float32).reshape(1, 1)
    lens2d = lens.astype(jnp.int32).reshape(B, 1)

    # Optional deeper input buffering (review: sweep Buffered(2) vs Buffered(3)
    # on v6e; keep the default 2x on v7x to respect the 64 MiB VMEM budget).
    x_spec_kwargs = {}
    if input_buffers is not None:
        x_spec_kwargs["pipeline_mode"] = pl.Buffered(int(input_buffers))
    x_spec = pl.BlockSpec((bblk, T, D), lambda i: (i, 0, 0), **x_spec_kwargs)

    out = pl.pallas_call(
        _make_attn_pool_kernel(tcn),
        out_shape=jax.ShapeDtypeStruct((B, D), inp.dtype),
        grid=grid,
        in_specs=[
            pl.BlockSpec((1, D), lambda i: (0, 0)),                # weight (resident)
            pl.BlockSpec(memory_space=pltpu.MemorySpace.SMEM),     # bias scalar
            pl.BlockSpec((bblk, 1), lambda i: (i, 0)),             # lens block
            x_spec,                                                # input rows
        ],
        out_specs=pl.BlockSpec((bblk, D), lambda i: (i, 0)),       # lane-dense 2-D out
        scratch_shapes=[pltpu.VMEM((bblk, T), jnp.float32)],       # raw scores
        compiler_params=pltpu.CompilerParams(
            dimension_semantics=("parallel",),
            vmem_limit_bytes=48 * 1024 * 1024,
        ),
    )(weight2d, bias2d, lens2d, inp)
    return out


def _reference(inp, lens, weight, bias):
    """Pure-JAX reference mirroring the PyTorch forward."""
    B, T, D = inp.shape
    x = inp.astype(jnp.float32)
    scores = jnp.einsum("btd,od->bt", x, weight.astype(jnp.float32)) \
        + bias.astype(jnp.float32)[0]
    mask = jnp.arange(T)[None, :] < lens[:, None]
    scores = jnp.where(mask, scores, -jnp.inf)
    probs = jax.nn.softmax(scores, axis=1)
    return jnp.einsum("bt,btd->bd", probs, x)


if __name__ == "__main__":
    def run_case(key, B, T, D, lens_list, dtype=jnp.float32, block_rows=None,
                 t_chunk=None, tol=2e-3):
        k_inp, k_w, k_b = jax.random.split(key, 3)
        inp = jax.random.normal(k_inp, (B, T, D), dtype=jnp.float32).astype(dtype)
        # nn.Linear(d_hid, 1): weight (1, d_hid), bias (1,)
        weight = jax.random.normal(k_w, (1, D), dtype=jnp.float32) * 0.1
        bias = jax.random.normal(k_b, (1,), dtype=jnp.float32) * 0.1
        lens = jnp.array(lens_list, dtype=jnp.int32)

        out = unflat_self_attention(inp, lens, weight, bias,
                                    block_rows=block_rows, t_chunk=t_chunk)
        out = jax.block_until_ready(out)
        ref = _reference(inp, lens, weight, bias)
        assert out.shape == (B, D)
        err = float(jnp.max(jnp.abs(out.astype(jnp.float32) - ref)))
        assert err <= tol, f"mismatch: max abs err {err}"

    key = jax.random.PRNGKey(0)
    k1, k2, k3, k4, k5 = jax.random.split(key, 5)

    # 1) Small shape consistent with the module (batch=2, seq=8, hidden=32);
    #    auto block size -> whole batch in a single grid step.
    run_case(k1, B=2, T=8, D=32, lens_list=[8, 5])

    # 2) Multi-step parallel grid: 16 rows, 8 per step -> grid=(2,), ragged lens.
    run_case(k2, B=16, T=24, D=64,
             lens_list=[24, 1, 7, 12, 24, 3, 20, 5, 9, 24, 2, 13, 6, 18, 24, 11],
             block_rows=8)

    # 3) B % block_rows != 0: grid=(2,); the last step's out-of-range rows are
    #    read as garbage and their outputs dropped by Pallas (relied upon).
    run_case(k3, B=10, T=16, D=64,
             lens_list=[16, 3, 9, 1, 16, 7, 12, 5, 2, 14], block_rows=8)

    # 4) Exercise the T-chunked score / pooling passes (3 chunks of 8).
    run_case(k4, B=8, T=24, D=64,
             lens_list=[24, 2, 11, 24, 6, 17, 9, 1], block_rows=8, t_chunk=8)

    # 5) bf16 input: the two big elementwise passes run in packed bf16
    #    (v6e/v7x VPU); softmax and accumulator stay f32.
    run_case(k5, B=8, T=16, D=64,
             lens_list=[16, 4, 10, 1, 16, 7, 13, 6],
             dtype=jnp.bfloat16, block_rows=8, tol=5e-2)

    print("KERNEL_OK")
</pallas_src>

<mosaic_0001>
module attributes {stable_mosaic.version = 11 : i64} {
  func.func @kernel(%arg0: i32, %arg1: memref<1x32xf32, #tpu.memory_space<vmem>>, %arg2: memref<1x1xf32, #tpu.memory_space<smem>>, %arg3: memref<2x1xi32, #tpu.memory_space<vmem>>, %arg4: memref<2x8x32xf32, #tpu.memory_space<vmem>>, %arg5: memref<2x32xf32, #tpu.memory_space<vmem>>, %arg6: memref<2x8xf32, #tpu.memory_space<vmem>>) attributes {dimension_semantics = [#tpu.dimension_semantics<parallel>], iteration_bounds = array<i64: 1>, scalar_prefetch = 0 : i64, scratch_operands = 1 : i64, tpu.core_type = #tpu.core_type<tc>, window_params = [{pipeline_mode = #tpu.pipeline_mode<synchronous>, transform_indices = @transform_0, window_bounds = array<i64: 1, 32>}, {transform_indices = @transform_1, window_bounds = array<i64: 1, 1>}, {transform_indices = @transform_2, window_bounds = array<i64: 2, 1>}, {transform_indices = @transform_3, window_bounds = array<i64: 2, 8, 32>}, {transform_indices = @transform_4, window_bounds = array<i64: 2, 32>}]} {
    %c0 = arith.constant 0 : index
    %c0_0 = arith.constant 0 : index
    %0 = vector.load %arg1[%c0, %c0_0] : memref<1x32xf32, #tpu.memory_space<vmem>>, vector<1x32xf32>
    %1 = vector.shape_cast %0 : vector<1x32xf32> to vector<1x1x32xf32>
    %c0_1 = arith.constant 0 : index
    %c0_2 = arith.constant 0 : index
    %2 = memref.load %arg2[%c0_1, %c0_2] : memref<1x1xf32, #tpu.memory_space<smem>>
    %c0_3 = arith.constant 0 : index
    %c0_4 = arith.constant 0 : index
    %c0_5 = arith.constant 0 : index
    %3 = vector.load %arg4[%c0_3, %c0_4, %c0_5] : memref<2x8x32xf32, #tpu.memory_space<vmem>>, vector<2x8x32xf32>
    %4 = vector.broadcast %1 : vector<1x1x32xf32> to vector<2x8x32xf32>
    %5 = arith.mulf %3, %4 : vector<2x8x32xf32>
    %cst = arith.constant dense<0.000000e+00> : vector<2x8xf32>
    %6 = vector.multi_reduction <add>, %5, %cst [2] : vector<2x8x32xf32> to vector<2x8xf32>
    %c0_6 = arith.constant 0 : index
    %c0_7 = arith.constant 0 : index
    %7 = vector.load %arg6[%c0_6, %c0_7] : memref<2x8xf32, #tpu.memory_space<vmem>>, vector<2x8xf32>
    tpu.vector_store %arg6[%c0_6, %c0_7], %6 {strides = array<i32>} : memref<2x8xf32, #tpu.memory_space<vmem>>, vector<2x8xf32>,
    %c0_8 = arith.constant 0 : index
    %c0_9 = arith.constant 0 : index
    %8 = vector.load %arg3[%c0_8, %c0_9] : memref<2x1xi32, #tpu.memory_space<vmem>>, vector<2x1xi32>
    %9 = tpu.iota {dimensions = array<i32: 1>} : vector<2x8xi32>
    %10 = vector.broadcast %8 : vector<2x1xi32> to vector<2x8xi32>
    %11 = arith.cmpi slt, %9, %10 : vector<2x8xi32>
    %c0_10 = arith.constant 0 : index
    %c0_11 = arith.constant 0 : index
    %12 = vector.load %arg6[%c0_10, %c0_11] : memref<2x8xf32, #tpu.memory_space<vmem>>, vector<2x8xf32>
    %13 = vector.broadcast %2 : f32 to vector<2x8xf32>
    %14 = arith.addf %12, %13 : vector<2x8xf32>
    %cst_12 = arith.constant -1.000000e+30 : f32
    %15 = vector.broadcast %cst_12 : f32 to vector<2x8xf32>
    %16 = arith.select %11, %14, %15 : vector<2x8xi1>, vector<2x8xf32>
    %cst_13 = arith.constant dense<0xFF800000> : vector<2xf32>
    %17 = vector.multi_reduction <maximumf>, %16, %cst_13 [1] : vector<2x8xf32> to vector<2xf32>
    %18 = vector.shape_cast %17 : vector<2xf32> to vector<2x1xf32>
    %19 = vector.broadcast %18 : vector<2x1xf32> to vector<2x8xf32>
    %20 = arith.subf %16, %19 : vector<2x8xf32>
    %21 = math.exp %20 : vector<2x8xf32>
    %cst_14 = arith.constant dense<0.000000e+00> : vector<2xf32>
    %22 = vector.multi_reduction <add>, %21, %cst_14 [1] : vector<2x8xf32> to vector<2xf32>
    %23 = vector.shape_cast %22 : vector<2xf32> to vector<2x1xf32>
    %cst_15 = arith.constant 1.000000e+00 : f32
    %24 = vector.broadcast %cst_15 : f32 to vector<2x1xf32>
    %25 = arith.divf %24, %23 : vector<2x1xf32>
    %c0_i32 = arith.constant 0 : i32
    %26 = vector.broadcast %c0_i32 : i32 to vector<2x1xi32>
    %27 = arith.cmpi sgt, %8, %26 : vector<2x1xi32>
    %cst_16 = arith.constant 0.000000e+00 : f32
    %28 = vector.broadcast %cst_16 : f32 to vector<2x1xf32>
    %29 = arith.select %27, %25, %28 : vector<2x1xi1>, vector<2x1xf32>
    %cst_17 = arith.constant 0.000000e+00 : f32
    %30 = vector.broadcast %cst_17 : f32 to vector<2x32xf32>
    %c0_18 = arith.constant 0 : index
    %c0_19 = arith.constant 0 : index
    %c0_20 = arith.constant 0 : index
    %31 = vector.load %arg4[%c0_18, %c0_19, %c0_20] : memref<2x8x32xf32, #tpu.memory_space<vmem>>, vector<2x8x32xf32>
    %32 = vector.shape_cast %21 : vector<2x8xf32> to vector<2x8x1xf32>
    %33 = vector.broadcast %32 : vector<2x8x1xf32> to vector<2x8x32xf32>
    %34 = arith.mulf %33, %31 : vector<2x8x32xf32>
    %cst_21 = arith.constant dense<0.000000e+00> : vector<2x32xf32>
    %35 = vector.multi_reduction <add>, %34, %cst_21 [1] : vector<2x8x32xf32> to vector<2x32xf32>
    %36 = arith.addf %30, %35 : vector<2x32xf32>
    %37 = vector.broadcast %29 : vector<2x1xf32> to vector<2x32xf32>
    %38 = arith.mulf %36, %37 : vector<2x32xf32>
    %c0_22 = arith.constant 0 : index
    %c0_23 = arith.constant 0 : index
    %39 = vector.load %arg5[%c0_22, %c0_23] : memref<2x32xf32, #tpu.memory_space<vmem>>, vector<2x32xf32>
    tpu.vector_store %arg5[%c0_22, %c0_23], %38 {strides = array<i32>} : memref<2x32xf32, #tpu.memory_space<vmem>>, vector<2x32xf32>,
    return
  }
  func.func @transform_0(%arg0: i32) -> (i32, i32) {
    %c0_i32 = arith.constant 0 : i32
    %c0_i32_0 = arith.constant 0 : i32
    %c0_i32_1 = arith.constant 0 : i32
    return %c0_i32, %c0_i32_0 : i32, i32
  }
  func.func @transform_1(%arg0: i32) -> (i32, i32) {
    %c0_i32 = arith.constant 0 : i32
    %c0_i32_0 = arith.constant 0 : i32
    %c0_i32_1 = arith.constant 0 : i32
    return %c0_i32, %c0_i32_0 : i32, i32
  }
  func.func @transform_2(%arg0: i32) -> (i32, i32) {
    %c0_i32 = arith.constant 0 : i32
    %c0_i32_0 = arith.constant 0 : i32
    return %arg0, %c0_i32 : i32, i32
  }
  func.func @transform_3(%arg0: i32) -> (i32, i32, i32) {
    %c0_i32 = arith.constant 0 : i32
    %c0_i32_0 = arith.constant 0 : i32
    %c0_i32_1 = arith.constant 0 : i32
    return %arg0, %c0_i32, %c0_i32_0 : i32, i32, i32
  }
  func.func @transform_4(%arg0: i32) -> (i32, i32) {
    %c0_i32 = arith.constant 0 : i32
    %c0_i32_0 = arith.constant 0 : i32
    return %arg0, %c0_i32 : i32, i32
  }
}

</mosaic_0001>

<llo_original>
// kernel: tpu_custom_call.1
$region0: #{tpu_custom_call.1}
  #allocation0 [shape = 'u32[]', space=smem, size = 0x4, offset = 0x4, fixed_abs, tag = 'smem constant byte address 0x4 - core index']
  #allocation1 [shape = 'u32[144,128]{1,0:T(1,128)}', space=vmem, size = 0x12000, scoped, tag = 'internal scratch']
  #allocation2 [shape = 'f32[2,8]{1,0:T(2,128)}', space=vmem, size = 0x400, scoped, tag = 'scratch operand']
  #allocation3 [shape = 'f32[1,1]{1,0:T(1,128)S(6)}', space=smem, size = 0x200, scoped, tag = 'scoped memory for tpu_custom_call.1']
  %s0 = inlined_call_operand.vmem [shape: f32[1,32], index: 0, kind: input, shape index: {}]
  %s1 = inlined_call_operand.<no memory space> [shape: f32[1,1], index: 1, kind: input, shape index: {}]
  %s2 = inlined_call_operand.vmem [shape: s32[2,1], index: 2, kind: input, shape index: {}]
  %s3 = inlined_call_operand.hbm [shape: f32[2,8,32], index: 3, kind: input, shape index: {}]
  %s4 = inlined_call_operand.hbm [shape: f32[2,32], index: 4, kind: output, shape index: {}]
  %s5 = sld [smem:[#allocation0]]
  $region30: #{tpu_custom_call.1} parent=0
    _
  %s7 = ssub.s32 1, %s5
  %s8 = scalar_select 0, %s7, %s5
  %9 = sst [smem:[#allocation3]] %s1
  $region1: #{tpu_custom_call.1} parent=0
    #allocation4 [shape = 'u8[8192]{0}', space=vmem, size = 0x2000, scoped, tag = 'input window, operand 3, single buffered']
    #allocation5 [shape = 's32[1]{0}', space=sflag, size = 0x4, scoped, tag = 'scoped memory for tpu_custom_call.1']
    #allocation6 [shape = 's32[1]{0}', space=sflag, size = 0x4, scoped, tag = 'scoped memory for tpu_custom_call.1']
    #allocation7 [shape = 'u8[1024]{0}', space=vmem, size = 0x400, scoped, tag = 'output window, operand 0, single buffered']
    %10 = vsyncpa [#allocation5], 0
    %11 = vsyncpa [#allocation6], 0
    // Predicated region
    $region2: #{tpu_custom_call.1} parent=1 // pred_check
      _
    $region3: #{tpu_custom_call.1} parent=1 // pred_check_branch
      %13 = sbr.rel (0) target = $region5
    $region4: #{tpu_custom_call.1} parent=1 // pred_region
      _
    $region5: #{tpu_custom_call.1} parent=1 // pred_fallthru
      _
    // Predicated region
    $region6: #{tpu_custom_call.1} parent=1 // pred_check
      _
    $region7: #{tpu_custom_call.1} parent=1 // pred_check_branch
      %15 = sbr.rel (0) target = $region9
    $region8: #{tpu_custom_call.1} parent=1 // pred_region
      _
    $region9: #{tpu_custom_call.1} parent=1 // pred_fallthru
      _
    // Predicated region
    $region10: #{tpu_custom_call.1} parent=1 // pred_check
      _
    $region11: #{tpu_custom_call.1} parent=1 // pred_check_branch
      %17 = sbr.rel (0) target = $region13
    $region12: #{tpu_custom_call.1} parent=1 // pred_region
      _
    $region13: #{tpu_custom_call.1} parent=1 // pred_fallthru
      _
    // Predicated region
    $region14: #{tpu_custom_call.1} parent=1 // pred_check
      _
    $region15: #{tpu_custom_call.1} parent=1 // pred_check_branch
      %19 = sbr.rel (0) target = $region17
    $region16: #{tpu_custom_call.1} parent=1 // pred_region
      %s21 = ssub.s32 256, 256
      %22 = vsyncadd [#allocation5], %s21
      %s23 = sshll.u32 [#allocation4], 4
      %s24 = int_to_ptr.vmem [resolvable:$true] %s23
      %29 = dma.hbm_to_vmem [thread:$0]  %s3, 256, %s24, [#allocation5], 128, 128, 8
    $region17: #{tpu_custom_call.1} parent=1 // pred_fallthru
      _
    // Predicated region
    $region18: #{tpu_custom_call.1} parent=1 // pred_check
      _
    $region19: #{tpu_custom_call.1} parent=1 // pred_check_branch
      %31 = sbr.rel (0) target = $region21
    $region20: #{tpu_custom_call.1} parent=1 // pred_region
      %32 = dma.done [#allocation5], 256
    $region21: #{tpu_custom_call.1} parent=1 // pred_fallthru
      _
    %v33 = vld [vmem:[%s0] sm:$0x1]
    %s34 = sld [smem:[#allocation3]]
    %v35 = vld [vmem:[#allocation4] sm:$0xff]
    %v36 = vld [vmem:[#allocation4 + $0x8] sm:$0xff]
    %v38 = vlaneseq
    %v39 = vshrl.u32 %v38, 7
    %v40 = vsub.s32 0, %v39
    %v41 = vrot.slane %v33, %v40
    %v43 = vmul.f32 %v35, %v41
    %v44 = vmul.f32 %v36, %v41
    %vm45 = vcmask 261120
    %v46 = vsel %vm45, %v43, 0.0
    %47 = vadd.xlane.f32.xlu0 %v46
    %v48 = vpop.xlane.xlu0 %47
    %v49 = vsel %vm45, %v44, 0.0
    %50 = vadd.xlane.f32.xlu0 %v49
    %v51 = vpop.xlane.xlu0 %50
    %v54 = vlaneseq
    %v55 = vand.u32 %v54, 127
    %v56 = vlaneseq
    %v57 = vshrl.u32 %v56, 7
    %v58 = vsub.s32 %v55, %v57
    %v59 = vrot.slane %v48, %v58
    %v60 = vlaneseq
    %v61 = vshrl.u32 %v60, 7
    %v62 = vsub.s32 %v55, %v61
    %v63 = vrot.slane %v51, %v62
    %vm64 = vcmask 1041409
    %v65 = vsel %vm64, %v63, %v59
    %vm67 = vcmask 58368
    %68 = vst.msk [vmem:[#allocation2] sm:$0x3] %vm67, %v65
    %v69 = vld [vmem:[%s2] sm:$0x3]
    %70 = vset.pattern.permute.xlu0 0
    %71 = vperm.xlu0 %70, %v69
    %v72 = vpop.permute.xlu0 %71
    %vm73 = vcmp.lt.s32.totalorder %v55, %v72
    %v74 = vld [vmem:[#allocation2] sm:$0x3]
    %v75 = vstv %s34
    %v76 = vadd.f32 %v74, %v75
    %v77 = vsel %vm73, %v76, -1e+30
    %v78 = vsel %vm67, %v77, -inf
    %79 = vmax.xlane.f32.xlu0 %v78
    %v80 = vpop.xlane.xlu0 %79
    %v81 = vsub.f32 %v77, %v80
    %v82 = vmul.f32 %v81, 1.442695
    %v83 = vpow.pop %v82
    %v84 = vsel %vm67, %v83, 0.0
    %85 = vadd.xlane.f32.xlu0 %v84
    %v86 = vpop.xlane.xlu0 %85
    %v87 = vrcp.pop %v86
    %v88 = vmul.f32 1.0, %v87
    %vm89 = vcmp.gt.s32.totalorder %v69, 0
    %v90 = vsel %vm89, %v88, 0.0
    %v91 = vld [vmem:[#allocation4] sm:$0xff]
    %v92 = vld [vmem:[#allocation4 + $0x8] sm:$0xff]
    %v93 = vlaneseq
    %v94 = vshrl.u32 %v93, 7
    %v95 = vsub.s32 0, %v94
    %v96 = vrot.slane %v83, %v95
    %98 = vbcast.lane.b32.xlu0 %v96, 256
    %v99 = vpop.permute.xlu0 %98
    %v100 = vlaneseq
    %v101 = vshrl.u32 %v100, 7
    %v102 = vsub.s32 1, %v101
    %v103 = vrot.slane %v83, %v102
    %105 = vbcast.lane.b32.xlu0 %v103, 256
    %v106 = vpop.permute.xlu0 %105
    %v107 = vmul.f32 %v99, %v91
    %v108 = vmul.f32 %v106, %v92
    %v109 = vsel %vm45, %v107, 0.0
    %v110 = vrot.slane %v109, 4
    %v111 = vadd.f32 %v109, %v110
    %v112 = vrot.slane %v111, 2
    %v113 = vadd.f32 %v111, %v112
    %v114 = vrot.slane %v113, 1
    %v115 = vadd.f32 %v113, %v114
    %v116 = vsel %vm45, %v108, 0.0
    %v117 = vrot.slane %v116, 4
    %v118 = vadd.f32 %v116, %v117
    %v119 = vrot.slane %v118, 2
    %v120 = vadd.f32 %v118, %v119
    %v121 = vrot.slane %v120, 1
    %v122 = vadd.f32 %v120, %v121
    %v123 = vadd.f32 %v115, 0.0
    %v124 = vadd.f32 %v122, 0.0
    %126 = vset.pattern.permute.xlu0 0
    %127 = vperm.xlu0 %126, %v90
    %v128 = vpop.permute.xlu0 %127
    %v129 = vrot.slane %v128, 1
    %v132 = vmul.f32 %v123, %v128
    %v133 = vmul.f32 %v124, %v129
    %v136 = vrot.slane %v133, 7
    %v137 = vsel %vm64, %v136, %v132
    %vm139 = vcmask 254976
    %140 = vst.msk [vmem:[#allocation7] sm:$0x3] %vm139, %v137
    // Predicated region
    $region22: #{tpu_custom_call.1} parent=1 // pred_check
      _
    $region23: #{tpu_custom_call.1} parent=1 // pred_check_branch
      %142 = sbr.rel (0) target = $region25
    $region24: #{tpu_custom_call.1} parent=1 // pred_region
      %s144 = ssub.s32 32, 32
      %145 = vsyncadd [#allocation6], %s144
      %s147 = sshll.u32 [#allocation7], 4
      %s148 = int_to_ptr.vmem [resolvable:$true] %s147
      %150 = dma.vmem_to_hbm [thread:$0]  %s148, 32, %s4, [#allocation6]
    $region25: #{tpu_custom_call.1} parent=1 // pred_fallthru
      _
    // Predicated region
    $region26: #{tpu_custom_call.1} parent=1 // pred_check
      _
    $region27: #{tpu_custom_call.1} parent=1 // pred_check_branch
      %152 = sbr.rel (0) target = $region29
    $region28: #{tpu_custom_call.1} parent=1 // pred_region
      %153 = dma.done [#allocation6], 32
    $region29: #{tpu_custom_call.1} parent=1 // pred_fallthru
      _
    %154 = vsyncpa [#allocation5], 1
    %155 = vsyncpa [#allocation6], 1

</llo_original>
